<compile_context>
chip_gen: v7x
topology: tpu7x:2x2x1
jax: 0.10.0
libtpu: 0.0.40
codegen_flags: <defaults>
</compile_context>

<pallas_src>
import functools

import jax
import jax.numpy as jnp
from jax.experimental import pallas as pl
from jax.experimental.pallas import tpu as pltpu


def _mlp_kernel(x_ref,
                w1_ref, b1_ref,
                w2_ref, b2_ref,
                w3_ref, b3_ref,
                w4_ref, b4_ref,
                o_ref):
    # lay1: Linear(256 -> 256 padded) + ReLU
    h = jnp.dot(x_ref[...], w1_ref[...], preferred_element_type=jnp.float32)
    h = jnp.maximum(h + b1_ref[...], 0.0)
    # lay2: Linear(256 -> 128) + ReLU
    h = jnp.dot(h.astype(w2_ref.dtype), w2_ref[...],
                preferred_element_type=jnp.float32)
    h = jnp.maximum(h + b2_ref[...], 0.0)
    # lay3: Linear(128 -> 256) + ReLU
    h = jnp.dot(h.astype(w3_ref.dtype), w3_ref[...],
                preferred_element_type=jnp.float32)
    h = jnp.maximum(h + b3_ref[...], 0.0)
    # lay4: Linear(256 -> 256 padded), no activation
    out = jnp.dot(h.astype(w4_ref.dtype), w4_ref[...],
                  preferred_element_type=jnp.float32)
    o_ref[...] = (out + b4_ref[...]).astype(o_ref.dtype)


def _round_up(n, m):
    return ((n + m - 1) // m) * m


def tar_to_pert_forward(x, params, *, block_batch=512,
                        compute_dtype=jnp.float32):
    """Run the TarToPert MLP (252->256->128->256->252) as one Pallas kernel.

    x: (B, 252) float32
    params: dict with w1..w4 as (in, out) matrices and b1..b4 as (1, out) rows
            (unpadded, f32). Padding / dtype casting is handled here.
    """
    B, D_in = x.shape
    assert D_in == 252
    D_pad = 256      # lane-aligned feature width (252 -> 256)
    H1, H2 = 256, 128
    out_dtype = jnp.float32

    # ---- batch tile selection (sublane-aligned for the compute dtype) ----
    sub = 16 if compute_dtype == jnp.bfloat16 else 8
    bb = max(sub, min(block_batch, _round_up(B, sub)))
    bb = _round_up(bb, sub)
    B_pad = _round_up(B, bb)
    grid = (B_pad // bb,)
    # Note: for large B the grid length is naturally >= 2, letting
    # dimension_semantics=("parallel",) shard batch tiles across v7x's 2 TCs.

    # ---- pad inputs / parameters to lane-dense shapes ----
    x_p = jnp.pad(x, ((0, B_pad - B), (0, D_pad - D_in))).astype(compute_dtype)
    w1 = jnp.pad(params["w1"], ((0, D_pad - D_in), (0, 0))).astype(compute_dtype)
    w2 = params["w2"].astype(compute_dtype)
    w3 = params["w3"].astype(compute_dtype)
    w4 = jnp.pad(params["w4"], ((0, 0), (0, D_pad - D_in))).astype(compute_dtype)
    b1 = params["b1"].astype(jnp.float32)
    b2 = params["b2"].astype(jnp.float32)
    b3 = params["b3"].astype(jnp.float32)
    b4 = jnp.pad(params["b4"], ((0, 0), (0, D_pad - D_in))).astype(jnp.float32)

    def full_spec(shape):
        # Whole parameter resident in VMEM; block index never changes.
        nd = len(shape)
        return pl.BlockSpec(shape, lambda i, _nd=nd: (0,) * _nd)

    in_specs = [
        pl.BlockSpec((bb, D_pad), lambda i: (i, 0)),   # x tile over batch
        full_spec(w1.shape), full_spec(b1.shape),
        full_spec(w2.shape), full_spec(b2.shape),
        full_spec(w3.shape), full_spec(b3.shape),
        full_spec(w4.shape), full_spec(b4.shape),
    ]
    out_spec = pl.BlockSpec((bb, D_pad), lambda i: (i, 0))

    # ---- cost / VMEM budgeting ----
    itemsize = jnp.dtype(compute_dtype).itemsize
    flops_per_row = 2 * (D_pad * H1 + H1 * H2 + H2 * H1 + H1 * D_pad)
    w_bytes = ((D_pad * H1 + H1 * H2 + H2 * H1 + H1 * D_pad) * itemsize
               + (H1 + H2 + H1 + D_pad) * 4)
    cost = pl.CostEstimate(
        flops=B_pad * flops_per_row,
        transcendentals=0,
        bytes_accessed=B_pad * D_pad * (itemsize + 4) + w_bytes)
    vmem_bytes = (2 * bb * D_pad * itemsize      # x tile, double-buffered
                  + 2 * bb * D_pad * 4           # out tile, double-buffered
                  + 2 * w_bytes                  # weights/biases (+buffering slack)
                  + 4 * bb * D_pad * 4)          # f32 intermediates
    vmem_limit = min(int(vmem_bytes * 1.5) + (2 << 20), 48 << 20)

    out_padded = pl.pallas_call(
        _mlp_kernel,
        out_shape=jax.ShapeDtypeStruct((B_pad, D_pad), out_dtype),
        grid_spec=pltpu.PrefetchScalarGridSpec(
            num_scalar_prefetch=0,
            grid=grid,
            in_specs=in_specs,
            out_specs=out_spec,
        ),
        compiler_params=pltpu.CompilerParams(
            dimension_semantics=("parallel",),
            vmem_limit_bytes=vmem_limit),
        cost_estimate=cost,
    )(x_p, w1, b1, w2, b2, w3, b3, w4, b4)

    # Slice away batch padding and the 4 padded output lanes.
    return out_padded[:B, :D_in]


def init_params(key):
    """Deterministic synthetic parameters matching TarToPert's layer shapes."""
    dims = [(252, 256), (256, 128), (128, 256), (256, 252)]
    params = {}
    keys = jax.random.split(key, 2 * len(dims))
    for idx, (d_in, d_out) in enumerate(dims):
        kw, kb = keys[2 * idx], keys[2 * idx + 1]
        bound = 1.0 / (d_in ** 0.5)  # PyTorch nn.Linear default init range
        params[f"w{idx + 1}"] = jax.random.uniform(
            kw, (d_in, d_out), jnp.float32, -bound, bound)
        params[f"b{idx + 1}"] = jax.random.uniform(
            kb, (1, d_out), jnp.float32, -bound, bound)
    return params


def _reference(x, p):
    h = jnp.maximum(x @ p["w1"] + p["b1"], 0.0)
    h = jnp.maximum(h @ p["w2"] + p["b2"], 0.0)
    h = jnp.maximum(h @ p["w3"] + p["b3"], 0.0)
    return h @ p["w4"] + p["b4"]


if __name__ == "__main__":
    key = jax.random.PRNGKey(0)
    k_params, k_x, k_x2 = jax.random.split(key, 3)
    params = init_params(k_params)

    # --- small f32 check (batch smaller than the default tile) ---
    batch = 8
    x = jax.random.normal(k_x, (batch, 252), jnp.float32)
    out = jax.block_until_ready(tar_to_pert_forward(x, params))
    ref = _reference(x, params)
    assert out.shape == (batch, 252)
    assert jnp.allclose(out, ref, atol=1e-4, rtol=1e-4)

    # --- multi-tile f32 check (grid > 1, exercises batch pipelining) ---
    batch2 = 32
    x2 = jax.random.normal(k_x2, (batch2, 252), jnp.float32)
    out2 = jax.block_until_ready(
        tar_to_pert_forward(x2, params, block_batch=8))
    ref2 = _reference(x2, params)
    assert out2.shape == (batch2, 252)
    assert jnp.allclose(out2, ref2, atol=1e-4, rtol=1e-4)

    # --- bf16-compute path (f32 accumulation), looser tolerance ---
    out_bf16 = jax.block_until_ready(
        tar_to_pert_forward(x, params, compute_dtype=jnp.bfloat16))
    assert out_bf16.shape == (batch, 252)
    assert jnp.allclose(out_bf16, ref, atol=2e-2, rtol=2e-2)

    print("KERNEL_OK")
</pallas_src>

<mosaic_0001>
module attributes {stable_mosaic.version = 11 : i64} {
  func.func @_mlp_kernel(%arg0: i32, %arg1: memref<8x256xf32, #tpu.memory_space<vmem>>, %arg2: memref<256x256xf32, #tpu.memory_space<vmem>>, %arg3: memref<1x256xf32, #tpu.memory_space<vmem>>, %arg4: memref<256x128xf32, #tpu.memory_space<vmem>>, %arg5: memref<1x128xf32, #tpu.memory_space<vmem>>, %arg6: memref<128x256xf32, #tpu.memory_space<vmem>>, %arg7: memref<1x256xf32, #tpu.memory_space<vmem>>, %arg8: memref<256x256xf32, #tpu.memory_space<vmem>>, %arg9: memref<1x256xf32, #tpu.memory_space<vmem>>, %arg10: memref<8x256xf32, #tpu.memory_space<vmem>>) attributes {dimension_semantics = [#tpu.dimension_semantics<parallel>], iteration_bounds = array<i64: 1>, scalar_prefetch = 0 : i64, scratch_operands = 0 : i64, tpu.core_type = #tpu.core_type<tc>, window_params = [{transform_indices = @transform_0, window_bounds = array<i64: 8, 256>}, {pipeline_mode = #tpu.pipeline_mode<synchronous>, transform_indices = @transform_1, window_bounds = array<i64: 256, 256>}, {pipeline_mode = #tpu.pipeline_mode<synchronous>, transform_indices = @transform_2, window_bounds = array<i64: 1, 256>}, {pipeline_mode = #tpu.pipeline_mode<synchronous>, transform_indices = @transform_3, window_bounds = array<i64: 256, 128>}, {pipeline_mode = #tpu.pipeline_mode<synchronous>, transform_indices = @transform_4, window_bounds = array<i64: 1, 128>}, {pipeline_mode = #tpu.pipeline_mode<synchronous>, transform_indices = @transform_5, window_bounds = array<i64: 128, 256>}, {pipeline_mode = #tpu.pipeline_mode<synchronous>, transform_indices = @transform_6, window_bounds = array<i64: 1, 256>}, {pipeline_mode = #tpu.pipeline_mode<synchronous>, transform_indices = @transform_7, window_bounds = array<i64: 256, 256>}, {pipeline_mode = #tpu.pipeline_mode<synchronous>, transform_indices = @transform_8, window_bounds = array<i64: 1, 256>}, {transform_indices = @transform_9, window_bounds = array<i64: 8, 256>}]} {
    %c0 = arith.constant 0 : index
    %c0_0 = arith.constant 0 : index
    %0 = vector.load %arg1[%c0, %c0_0] : memref<8x256xf32, #tpu.memory_space<vmem>>, vector<8x256xf32>
    %c0_1 = arith.constant 0 : index
    %c0_2 = arith.constant 0 : index
    %1 = vector.load %arg2[%c0_1, %c0_2] : memref<256x256xf32, #tpu.memory_space<vmem>>, vector<256x256xf32>
    %cst = arith.constant dense<0.000000e+00> : vector<8x256xf32>
    %2 = tpu.matmul %0, %1, %cst {dimension_numbers = #tpu.dot_dimension_numbers<[1], [0], [0], [1], [0, 0, 1, 1], [], []>} : vector<8x256xf32>, vector<256x256xf32>, vector<8x256xf32> -> vector<8x256xf32>
    %c0_3 = arith.constant 0 : index
    %c0_4 = arith.constant 0 : index
    %3 = vector.load %arg3[%c0_3, %c0_4] : memref<1x256xf32, #tpu.memory_space<vmem>>, vector<1x256xf32>
    %4 = vector.broadcast %3 : vector<1x256xf32> to vector<8x256xf32>
    %5 = arith.addf %2, %4 : vector<8x256xf32>
    %cst_5 = arith.constant 0.000000e+00 : f32
    %6 = vector.broadcast %cst_5 : f32 to vector<8x256xf32>
    %7 = arith.maximumf %5, %6 : vector<8x256xf32>
    %c0_6 = arith.constant 0 : index
    %c0_7 = arith.constant 0 : index
    %8 = vector.load %arg4[%c0_6, %c0_7] : memref<256x128xf32, #tpu.memory_space<vmem>>, vector<256x128xf32>
    %cst_8 = arith.constant dense<0.000000e+00> : vector<8x128xf32>
    %9 = tpu.matmul %7, %8, %cst_8 {dimension_numbers = #tpu.dot_dimension_numbers<[1], [0], [0], [1], [0, 0, 1, 1], [], []>} : vector<8x256xf32>, vector<256x128xf32>, vector<8x128xf32> -> vector<8x128xf32>
    %c0_9 = arith.constant 0 : index
    %c0_10 = arith.constant 0 : index
    %10 = vector.load %arg5[%c0_9, %c0_10] : memref<1x128xf32, #tpu.memory_space<vmem>>, vector<1x128xf32>
    %11 = vector.broadcast %10 : vector<1x128xf32> to vector<8x128xf32>
    %12 = arith.addf %9, %11 : vector<8x128xf32>
    %cst_11 = arith.constant 0.000000e+00 : f32
    %13 = vector.broadcast %cst_11 : f32 to vector<8x128xf32>
    %14 = arith.maximumf %12, %13 : vector<8x128xf32>
    %c0_12 = arith.constant 0 : index
    %c0_13 = arith.constant 0 : index
    %15 = vector.load %arg6[%c0_12, %c0_13] : memref<128x256xf32, #tpu.memory_space<vmem>>, vector<128x256xf32>
    %cst_14 = arith.constant dense<0.000000e+00> : vector<8x256xf32>
    %16 = tpu.matmul %14, %15, %cst_14 {dimension_numbers = #tpu.dot_dimension_numbers<[1], [0], [0], [1], [0, 0, 1, 1], [], []>} : vector<8x128xf32>, vector<128x256xf32>, vector<8x256xf32> -> vector<8x256xf32>
    %c0_15 = arith.constant 0 : index
    %c0_16 = arith.constant 0 : index
    %17 = vector.load %arg7[%c0_15, %c0_16] : memref<1x256xf32, #tpu.memory_space<vmem>>, vector<1x256xf32>
    %18 = vector.broadcast %17 : vector<1x256xf32> to vector<8x256xf32>
    %19 = arith.addf %16, %18 : vector<8x256xf32>
    %cst_17 = arith.constant 0.000000e+00 : f32
    %20 = vector.broadcast %cst_17 : f32 to vector<8x256xf32>
    %21 = arith.maximumf %19, %20 : vector<8x256xf32>
    %c0_18 = arith.constant 0 : index
    %c0_19 = arith.constant 0 : index
    %22 = vector.load %arg8[%c0_18, %c0_19] : memref<256x256xf32, #tpu.memory_space<vmem>>, vector<256x256xf32>
    %cst_20 = arith.constant dense<0.000000e+00> : vector<8x256xf32>
    %23 = tpu.matmul %21, %22, %cst_20 {dimension_numbers = #tpu.dot_dimension_numbers<[1], [0], [0], [1], [0, 0, 1, 1], [], []>} : vector<8x256xf32>, vector<256x256xf32>, vector<8x256xf32> -> vector<8x256xf32>
    %c0_21 = arith.constant 0 : index
    %c0_22 = arith.constant 0 : index
    %24 = vector.load %arg9[%c0_21, %c0_22] : memref<1x256xf32, #tpu.memory_space<vmem>>, vector<1x256xf32>
    %25 = vector.broadcast %24 : vector<1x256xf32> to vector<8x256xf32>
    %26 = arith.addf %23, %25 : vector<8x256xf32>
    %c0_23 = arith.constant 0 : index
    %c0_24 = arith.constant 0 : index
    %27 = vector.load %arg10[%c0_23, %c0_24] : memref<8x256xf32, #tpu.memory_space<vmem>>, vector<8x256xf32>
    tpu.vector_store %arg10[%c0_23, %c0_24], %26 {strides = array<i32>} : memref<8x256xf32, #tpu.memory_space<vmem>>, vector<8x256xf32>,
    return
  }
  func.func @transform_0(%arg0: i32) -> (i32, i32) {
    %c0_i32 = arith.constant 0 : i32
    %c0_i32_0 = arith.constant 0 : i32
    return %arg0, %c0_i32 : i32, i32
  }
  func.func @transform_1(%arg0: i32) -> (i32, i32) {
    %c0_i32 = arith.constant 0 : i32
    %c0_i32_0 = arith.constant 0 : i32
    %c0_i32_1 = arith.constant 0 : i32
    return %c0_i32, %c0_i32_0 : i32, i32
  }
  func.func @transform_2(%arg0: i32) -> (i32, i32) {
    %c0_i32 = arith.constant 0 : i32
    %c0_i32_0 = arith.constant 0 : i32
    %c0_i32_1 = arith.constant 0 : i32
    return %c0_i32, %c0_i32_0 : i32, i32
  }
  func.func @transform_3(%arg0: i32) -> (i32, i32) {
    %c0_i32 = arith.constant 0 : i32
    %c0_i32_0 = arith.constant 0 : i32
    %c0_i32_1 = arith.constant 0 : i32
    return %c0_i32, %c0_i32_0 : i32, i32
  }
  func.func @transform_4(%arg0: i32) -> (i32, i32) {
    %c0_i32 = arith.constant 0 : i32
    %c0_i32_0 = arith.constant 0 : i32
    %c0_i32_1 = arith.constant 0 : i32
    return %c0_i32, %c0_i32_0 : i32, i32
  }
  func.func @transform_5(%arg0: i32) -> (i32, i32) {
    %c0_i32 = arith.constant 0 : i32
    %c0_i32_0 = arith.constant 0 : i32
    %c0_i32_1 = arith.constant 0 : i32
    return %c0_i32, %c0_i32_0 : i32, i32
  }
  func.func @transform_6(%arg0: i32) -> (i32, i32) {
    %c0_i32 = arith.constant 0 : i32
    %c0_i32_0 = arith.constant 0 : i32
    %c0_i32_1 = arith.constant 0 : i32
    return %c0_i32, %c0_i32_0 : i32, i32
  }
  func.func @transform_7(%arg0: i32) -> (i32, i32) {
    %c0_i32 = arith.constant 0 : i32
    %c0_i32_0 = arith.constant 0 : i32
    %c0_i32_1 = arith.constant 0 : i32
    return %c0_i32, %c0_i32_0 : i32, i32
  }
  func.func @transform_8(%arg0: i32) -> (i32, i32) {
    %c0_i32 = arith.constant 0 : i32
    %c0_i32_0 = arith.constant 0 : i32
    %c0_i32_1 = arith.constant 0 : i32
    return %c0_i32, %c0_i32_0 : i32, i32
  }
  func.func @transform_9(%arg0: i32) -> (i32, i32) {
    %c0_i32 = arith.constant 0 : i32
    %c0_i32_0 = arith.constant 0 : i32
    return %arg0, %c0_i32 : i32, i32
  }
}

</mosaic_0001>

<llo_original>
// kernel: tpu_custom_call.1
$region0: #{tpu_custom_call.1}
  #allocation0 [shape = 'u32[]', space=smem, size = 0x4, offset = 0x4, fixed_abs, tag = 'smem constant byte address 0x4 - core index']
  #allocation1 [shape = 'u32[144,128]{1,0:T(1,128)}', space=vmem, size = 0x12000, scoped, tag = 'internal scratch']
  %s0 = inlined_call_operand.hbm [shape: f32[8,256], index: 0, kind: input, shape index: {}]
  %s1 = inlined_call_operand.hbm [shape: f32[256,256], index: 1, kind: input, shape index: {}]
  %s2 = inlined_call_operand.vmem [shape: f32[1,256], index: 2, kind: input, shape index: {}]
  %s3 = inlined_call_operand.hbm [shape: f32[256,128], index: 3, kind: input, shape index: {}]
  %s4 = inlined_call_operand.vmem [shape: f32[1,128], index: 4, kind: input, shape index: {}]
  %s5 = inlined_call_operand.hbm [shape: f32[128,256], index: 5, kind: input, shape index: {}]
  %s6 = inlined_call_operand.vmem [shape: f32[1,256], index: 6, kind: input, shape index: {}]
  %s7 = inlined_call_operand.hbm [shape: f32[256,256], index: 7, kind: input, shape index: {}]
  %s8 = inlined_call_operand.vmem [shape: f32[1,256], index: 8, kind: input, shape index: {}]
  %s9 = inlined_call_operand.hbm [shape: f32[8,256], index: 9, kind: output, shape index: {}]
  %s10 = sld [smem:[#allocation0]]
  $region66: #{tpu_custom_call.1} parent=0
    _
  %s12 = ssub.s32 1, %s10
  %s13 = scalar_select 0, %s12, %s10
  $region1: #{tpu_custom_call.1} parent=0
    #allocation2 [shape = 'u8[8192]{0}', space=vmem, size = 0x2000, scoped, tag = 'input window, operand 0, single buffered']
    #allocation3 [shape = 's32[1]{0}', space=sflag, size = 0x4, scoped, tag = 'scoped memory for tpu_custom_call.1']
    #allocation4 [shape = 's32[1]{0}', space=sflag, size = 0x4, scoped, tag = 'scoped memory for tpu_custom_call.1']
    #allocation5 [shape = 'u8[262144]{0}', space=vmem, size = 0x40000, scoped, tag = 'input window, operand 1, single buffered']
    #allocation6 [shape = 's32[1]{0}', space=sflag, size = 0x4, scoped, tag = 'scoped memory for tpu_custom_call.1']
    #allocation7 [shape = 'u8[131072]{0}', space=vmem, size = 0x20000, scoped, tag = 'input window, operand 3, single buffered']
    #allocation8 [shape = 'u8[131072]{0}', space=vmem, size = 0x20000, scoped, tag = 'input window, operand 5, single buffered']
    #allocation9 [shape = 's32[1]{0}', space=sflag, size = 0x4, scoped, tag = 'scoped memory for tpu_custom_call.1']
    #allocation10 [shape = 'u8[262144]{0}', space=vmem, size = 0x40000, scoped, tag = 'input window, operand 7, single buffered']
    #allocation11 [shape = 'u8[8192]{0}', space=vmem, size = 0x2000, scoped, tag = 'output window, operand 0, single buffered']
    %14 = vsyncpa [#allocation3], 0
    %15 = vsyncpa [#allocation6], 0
    %16 = vsyncpa [#allocation9], 0
    %17 = vsyncpa [#allocation4], 0
    // Predicated region
    $region2: #{tpu_custom_call.1} parent=1 // pred_check
      _
    $region3: #{tpu_custom_call.1} parent=1 // pred_check_branch
      %19 = sbr.rel (0) target = $region5
    $region4: #{tpu_custom_call.1} parent=1 // pred_region
      %s21 = ssub.s32 256, 256
      %22 = vsyncadd [#allocation3], %s21
      %s24 = sshll.u32 [#allocation2], 4
      %s25 = int_to_ptr.vmem [resolvable:$true] %s24
      %27 = dma.hbm_to_vmem [thread:$0]  %s0, 256, %s25, [#allocation3]
    $region5: #{tpu_custom_call.1} parent=1 // pred_fallthru
      _
    // Predicated region
    $region6: #{tpu_custom_call.1} parent=1 // pred_check
      _
    $region7: #{tpu_custom_call.1} parent=1 // pred_check_branch
      %29 = sbr.rel (0) target = $region9
    $region8: #{tpu_custom_call.1} parent=1 // pred_region
      %s31 = ssub.s32 8192, 8192
      %32 = vsyncadd [#allocation6], %s31
      %s33 = sshll.u32 [#allocation5], 4
      %s34 = int_to_ptr.vmem [resolvable:$true] %s33
      %39 = dma.hbm_to_vmem [thread:$0]  %s1, 8192, %s34, [#allocation6], 256, 256, 16
    $region9: #{tpu_custom_call.1} parent=1 // pred_fallthru
      _
    // Predicated region
    $region10: #{tpu_custom_call.1} parent=1 // pred_check
      _
    $region11: #{tpu_custom_call.1} parent=1 // pred_check_branch
      %41 = sbr.rel (0) target = $region13
    $region12: #{tpu_custom_call.1} parent=1 // pred_region
      _
    $region13: #{tpu_custom_call.1} parent=1 // pred_fallthru
      _
    // Predicated region
    $region14: #{tpu_custom_call.1} parent=1 // pred_check
      _
    $region15: #{tpu_custom_call.1} parent=1 // pred_check_branch
      %43 = sbr.rel (0) target = $region17
    $region16: #{tpu_custom_call.1} parent=1 // pred_region
      %s45 = ssub.s32 4096, 4096
      %46 = vsyncadd [#allocation6], %s45
      %s47 = sshll.u32 [#allocation7], 4
      %s48 = int_to_ptr.vmem [resolvable:$true] %s47
      %53 = dma.hbm_to_vmem [thread:$0]  %s3, 4096, %s48, [#allocation6], 128, 128, 8
    $region17: #{tpu_custom_call.1} parent=1 // pred_fallthru
      _
    // Predicated region
    $region18: #{tpu_custom_call.1} parent=1 // pred_check
      _
    $region19: #{tpu_custom_call.1} parent=1 // pred_check_branch
      %55 = sbr.rel (0) target = $region21
    $region20: #{tpu_custom_call.1} parent=1 // pred_region
      _
    $region21: #{tpu_custom_call.1} parent=1 // pred_fallthru
      _
    // Predicated region
    $region22: #{tpu_custom_call.1} parent=1 // pred_check
      _
    $region23: #{tpu_custom_call.1} parent=1 // pred_check_branch
      %57 = sbr.rel (0) target = $region25
    $region24: #{tpu_custom_call.1} parent=1 // pred_region
      %s59 = ssub.s32 4096, 4096
      %60 = vsyncadd [#allocation9], %s59
      %s61 = sshll.u32 [#allocation8], 4
      %s62 = int_to_ptr.vmem [resolvable:$true] %s61
      %67 = dma.hbm_to_vmem [thread:$0]  %s5, 4096, %s62, [#allocation9], 256, 256, 16
    $region25: #{tpu_custom_call.1} parent=1 // pred_fallthru
      _
    // Predicated region
    $region26: #{tpu_custom_call.1} parent=1 // pred_check
      _
    $region27: #{tpu_custom_call.1} parent=1 // pred_check_branch
      %69 = sbr.rel (0) target = $region29
    $region28: #{tpu_custom_call.1} parent=1 // pred_region
      _
    $region29: #{tpu_custom_call.1} parent=1 // pred_fallthru
      _
    // Predicated region
    $region30: #{tpu_custom_call.1} parent=1 // pred_check
      _
    $region31: #{tpu_custom_call.1} parent=1 // pred_check_branch
      %71 = sbr.rel (0) target = $region33
    $region32: #{tpu_custom_call.1} parent=1 // pred_region
      %s73 = ssub.s32 8192, 8192
      %74 = vsyncadd [#allocation9], %s73
      %s75 = sshll.u32 [#allocation10], 4
      %s76 = int_to_ptr.vmem [resolvable:$true] %s75
      %81 = dma.hbm_to_vmem [thread:$0]  %s7, 8192, %s76, [#allocation9], 256, 256, 16
    $region33: #{tpu_custom_call.1} parent=1 // pred_fallthru
      _
    // Predicated region
    $region34: #{tpu_custom_call.1} parent=1 // pred_check
      _
    $region35: #{tpu_custom_call.1} parent=1 // pred_check_branch
      %83 = sbr.rel (0) target = $region37
    $region36: #{tpu_custom_call.1} parent=1 // pred_region
      _
    $region37: #{tpu_custom_call.1} parent=1 // pred_fallthru
      _
    // Predicated region
    $region38: #{tpu_custom_call.1} parent=1 // pred_check
      _
    $region39: #{tpu_custom_call.1} parent=1 // pred_check_branch
      %85 = sbr.rel (0) target = $region41
    $region40: #{tpu_custom_call.1} parent=1 // pred_region
      %86 = dma.done [#allocation3], 256
    $region41: #{tpu_custom_call.1} parent=1 // pred_fallthru
      _
    // Predicated region
    $region42: #{tpu_custom_call.1} parent=1 // pred_check
      _
    $region43: #{tpu_custom_call.1} parent=1 // pred_check_branch
      %88 = sbr.rel (0) target = $region45
    $region44: #{tpu_custom_call.1} parent=1 // pred_region
      %89 = dma.done [#allocation6], 8192
    $region45: #{tpu_custom_call.1} parent=1 // pred_fallthru
      _
    // Predicated region
    $region46: #{tpu_custom_call.1} parent=1 // pred_check
      _
    $region47: #{tpu_custom_call.1} parent=1 // pred_check_branch
      %91 = sbr.rel (0) target = $region49
    $region48: #{tpu_custom_call.1} parent=1 // pred_region
      %92 = dma.done [#allocation6], 4096
    $region49: #{tpu_custom_call.1} parent=1 // pred_fallthru
      _
    // Predicated region
    $region50: #{tpu_custom_call.1} parent=1 // pred_check
      _
    $region51: #{tpu_custom_call.1} parent=1 // pred_check_branch
      %94 = sbr.rel (0) target = $region53
    $region52: #{tpu_custom_call.1} parent=1 // pred_region
      %95 = dma.done [#allocation9], 4096
    $region53: #{tpu_custom_call.1} parent=1 // pred_fallthru
      _
    // Predicated region
    $region54: #{tpu_custom_call.1} parent=1 // pred_check
      _
    $region55: #{tpu_custom_call.1} parent=1 // pred_check_branch
      %97 = sbr.rel (0) target = $region57
    $region56: #{tpu_custom_call.1} parent=1 // pred_region
      %98 = dma.done [#allocation9], 8192
    $region57: #{tpu_custom_call.1} parent=1 // pred_fallthru
      _
    %v99 = vld [vmem:[#allocation2] sm:$0xff]
    %v100 = vld [vmem:[#allocation2 + $0x8] sm:$0xff]
    %v101 = vld [vmem:[#allocation5] sm:$0xff]
    %v102 = vld [vmem:[#allocation5 + $0x8] sm:$0xff]
    %v103 = vld [vmem:[#allocation5 + $0x10] sm:$0xff]
    %v104 = vld [vmem:[#allocation5 + $0x18] sm:$0xff]
    %v105 = vld [vmem:[#allocation5 + $0x20] sm:$0xff]
    %v106 = vld [vmem:[#allocation5 + $0x28] sm:$0xff]
    %v107 = vld [vmem:[#allocation5 + $0x30] sm:$0xff]
    %v108 = vld [vmem:[#allocation5 + $0x38] sm:$0xff]
    %v109 = vld [vmem:[#allocation5 + $0x40] sm:$0xff]
    %v110 = vld [vmem:[#allocation5 + $0x48] sm:$0xff]
    %v111 = vld [vmem:[#allocation5 + $0x50] sm:$0xff]
    %v112 = vld [vmem:[#allocation5 + $0x58] sm:$0xff]
    %v113 = vld [vmem:[#allocation5 + $0x60] sm:$0xff]
    %v114 = vld [vmem:[#allocation5 + $0x68] sm:$0xff]
    %v115 = vld [vmem:[#allocation5 + $0x70] sm:$0xff]
    %v116 = vld [vmem:[#allocation5 + $0x78] sm:$0xff]
    %v117 = vld [vmem:[#allocation5 + $0x80] sm:$0xff]
    %v118 = vld [vmem:[#allocation5 + $0x88] sm:$0xff]
    %v119 = vld [vmem:[#allocation5 + $0x90] sm:$0xff]
    %v120 = vld [vmem:[#allocation5 + $0x98] sm:$0xff]
    %v121 = vld [vmem:[#allocation5 + $0xa0] sm:$0xff]
    %v122 = vld [vmem:[#allocation5 + $0xa8] sm:$0xff]
    %v123 = vld [vmem:[#allocation5 + $0xb0] sm:$0xff]
    %v124 = vld [vmem:[#allocation5 + $0xb8] sm:$0xff]
    %v125 = vld [vmem:[#allocation5 + $0xc0] sm:$0xff]
    %v126 = vld [vmem:[#allocation5 + $0xc8] sm:$0xff]
    %v127 = vld [vmem:[#allocation5 + $0xd0] sm:$0xff]
    %v128 = vld [vmem:[#allocation5 + $0xd8] sm:$0xff]
    %v129 = vld [vmem:[#allocation5 + $0xe0] sm:$0xff]
    %v130 = vld [vmem:[#allocation5 + $0xe8] sm:$0xff]
    %v131 = vld [vmem:[#allocation5 + $0xf0] sm:$0xff]
    %v132 = vld [vmem:[#allocation5 + $0xf8] sm:$0xff]
    %v133 = vld [vmem:[#allocation5 + $0x100] sm:$0xff]
    %v134 = vld [vmem:[#allocation5 + $0x108] sm:$0xff]
    %v135 = vld [vmem:[#allocation5 + $0x110] sm:$0xff]
    %v136 = vld [vmem:[#allocation5 + $0x118] sm:$0xff]
    %v137 = vld [vmem:[#allocation5 + $0x120] sm:$0xff]
    %v138 = vld [vmem:[#allocation5 + $0x128] sm:$0xff]
    %v139 = vld [vmem:[#allocation5 + $0x130] sm:$0xff]
    %v140 = vld [vmem:[#allocation5 + $0x138] sm:$0xff]
    %v141 = vld [vmem:[#allocation5 + $0x140] sm:$0xff]
    %v142 = vld [vmem:[#allocation5 + $0x148] sm:$0xff]
    %v143 = vld [vmem:[#allocation5 + $0x150] sm:$0xff]
    %v144 = vld [vmem:[#allocation5 + $0x158] sm:$0xff]
    %v145 = vld [vmem:[#allocation5 + $0x160] sm:$0xff]
    %v146 = vld [vmem:[#allocation5 + $0x168] sm:$0xff]
    %v147 = vld [vmem:[#allocation5 + $0x170] sm:$0xff]
    %v148 = vld [vmem:[#allocation5 + $0x178] sm:$0xff]
    %v149 = vld [vmem:[#allocation5 + $0x180] sm:$0xff]
    %v150 = vld [vmem:[#allocation5 + $0x188] sm:$0xff]
    %v151 = vld [vmem:[#allocation5 + $0x190] sm:$0xff]
    %v152 = vld [vmem:[#allocation5 + $0x198] sm:$0xff]
    %v153 = vld [vmem:[#allocation5 + $0x1a0] sm:$0xff]
    %v154 = vld [vmem:[#allocation5 + $0x1a8] sm:$0xff]
    %v155 = vld [vmem:[#allocation5 + $0x1b0] sm:$0xff]
    %v156 = vld [vmem:[#allocation5 + $0x1b8] sm:$0xff]
    %v157 = vld [vmem:[#allocation5 + $0x1c0] sm:$0xff]
    %v158 = vld [vmem:[#allocation5 + $0x1c8] sm:$0xff]
    %v159 = vld [vmem:[#allocation5 + $0x1d0] sm:$0xff]
    %v160 = vld [vmem:[#allocation5 + $0x1d8] sm:$0xff]
    %v161 = vld [vmem:[#allocation5 + $0x1e0] sm:$0xff]
    %v162 = vld [vmem:[#allocation5 + $0x1e8] sm:$0xff]
    %v163 = vld [vmem:[#allocation5 + $0x1f0] sm:$0xff]
    %v164 = vld [vmem:[#allocation5 + $0x1f8] sm:$0xff]
    %v165 = vld [vmem:[%s2] sm:$0x3]
    %v167 = vlaneseq
    %v168 = vshrl.u32 %v167, 7
    %v169 = vsub.s32 0, %v168
    %v170 = vrot.slane %v165, %v169
    %v171 = vlaneseq
    %v172 = vshrl.u32 %v171, 7
    %v173 = vsub.s32 1, %v172
    %v174 = vrot.slane %v165, %v173
    %177 = vmatprep.subr.mxu0 %v102
    %178 = vmatpush1.msra.mxu0 %v101
    %179 = vmatprep.subr.mxu0 %v104
    %180 = vmatpush1.msra.mxu0 %v103
    %181 = vmatprep.subr.mxu0 %v106
    %182 = vmatpush1.msra.mxu0 %v105
    %183 = vmatprep.subr.mxu0 %v108
    %184 = vmatpush1.msra.mxu0 %v107
    %185 = vmatprep.subr.mxu0 %v110
    %186 = vmatpush1.msra.mxu0 %v109
    %187 = vmatprep.subr.mxu0 %v112
    %188 = vmatpush1.msra.mxu0 %v111
    %189 = vmatprep.subr.mxu0 %v114
    %190 = vmatpush1.msra.mxu0 %v113
    %191 = vmatprep.subr.mxu0 %v116
    %192 = vmatpush1.msra.mxu0 %v115
    %193 = vmatprep.subr.mxu0 %v118
    %194 = vmatpush1.msra.mxu0 %v117
    %195 = vmatprep.subr.mxu0 %v120
    %196 = vmatpush1.msra.mxu0 %v119
    %197 = vmatprep.subr.mxu0 %v122
    %198 = vmatpush1.msra.mxu0 %v121
    %199 = vmatprep.subr.mxu0 %v124
    %200 = vmatpush1.msra.mxu0 %v123
    %201 = vmatprep.subr.mxu0 %v126
    %202 = vmatpush1.msra.mxu0 %v125
    %203 = vmatprep.subr.mxu0 %v128
    %204 = vmatpush1.msra.mxu0 %v127
    %205 = vmatprep.subr.mxu0 %v130
    %206 = vmatpush1.msra.mxu0 %v129
    %207 = vmatprep.subr.mxu0 %v132
    %208 = vmatpush1.msra.mxu0 %v131
    %209 = vmatprep.subr.mxu0 %v134
    %210 = vmatpush1.msra.mxu0 %v133
    %211 = vmatprep.subr.mxu0 %v136
    %212 = vmatpush1.msra.mxu0 %v135
    %213 = vmatprep.subr.mxu0 %v138
    %214 = vmatpush1.msra.mxu0 %v137
    %215 = vmatprep.subr.mxu0 %v140
    %216 = vmatpush1.msra.mxu0 %v139
    %217 = vmatprep.subr.mxu0 %v142
    %218 = vmatpush1.msra.mxu0 %v141
    %219 = vmatprep.subr.mxu0 %v144
    %220 = vmatpush1.msra.mxu0 %v143
    %221 = vmatprep.subr.mxu0 %v146
    %222 = vmatpush1.msra.mxu0 %v145
    %223 = vmatprep.subr.mxu0 %v148
    %224 = vmatpush1.msra.mxu0 %v147
    %225 = vmatprep.subr.mxu0 %v150
    %226 = vmatpush1.msra.mxu0 %v149
    %227 = vmatprep.subr.mxu0 %v152
    %228 = vmatpush1.msra.mxu0 %v151
    %229 = vmatprep.subr.mxu0 %v154
    %230 = vmatpush1.msra.mxu0 %v153
    %231 = vmatprep.subr.mxu0 %v156
    %232 = vmatpush1.msra.mxu0 %v155
    %233 = vmatprep.subr.mxu0 %v158
    %234 = vmatpush1.msra.mxu0 %v157
    %235 = vmatprep.subr.mxu0 %v160
    %236 = vmatpush1.msra.mxu0 %v159
    %237 = vmatprep.subr.mxu0 %v162
    %238 = vmatpush1.msra.mxu0 %v161
    %239 = vmatprep.subr.mxu0 %v164
    %240 = vmatpush1.msra.mxu0 %v163
    %241 = vmatprep.mubr.f32.mxu0 %v100
    %242 = vmatmul.mubr.f32.gmra.mrb[0].mxu0 %v99
    %v243 = vpop.f32.mrb[0].mxu0
    %v244 = vadd.f32 %v170, %v243
    %v245 = vpop.f32.mrb[0].mxu0
    %v246 = vadd.f32 %v174, %v245
    %247 = vdwg.mxu0
    %v248 = vmax.f32 %v244, 0.0
    %v249 = vmax.f32 %v246, 0.0
    %v250 = vld [vmem:[#allocation7] sm:$0xff]
    %v251 = vld [vmem:[#allocation7 + $0x8] sm:$0xff]
    %v252 = vld [vmem:[#allocation7 + $0x10] sm:$0xff]
    %v253 = vld [vmem:[#allocation7 + $0x18] sm:$0xff]
    %v254 = vld [vmem:[#allocation7 + $0x20] sm:$0xff]
    %v255 = vld [vmem:[#allocation7 + $0x28] sm:$0xff]
    %v256 = vld [vmem:[#allocation7 + $0x30] sm:$0xff]
    %v257 = vld [vmem:[#allocation7 + $0x38] sm:$0xff]
    %v258 = vld [vmem:[#allocation7 + $0x40] sm:$0xff]
    %v259 = vld [vmem:[#allocation7 + $0x48] sm:$0xff]
    %v260 = vld [vmem:[#allocation7 + $0x50] sm:$0xff]
    %v261 = vld [vmem:[#allocation7 + $0x58] sm:$0xff]
    %v262 = vld [vmem:[#allocation7 + $0x60] sm:$0xff]
    %v263 = vld [vmem:[#allocation7 + $0x68] sm:$0xff]
    %v264 = vld [vmem:[#allocation7 + $0x70] sm:$0xff]
    %v265 = vld [vmem:[#allocation7 + $0x78] sm:$0xff]
    %v266 = vld [vmem:[#allocation7 + $0x80] sm:$0xff]
    %v267 = vld [vmem:[#allocation7 + $0x88] sm:$0xff]
    %v268 = vld [vmem:[#allocation7 + $0x90] sm:$0xff]
    %v269 = vld [vmem:[#allocation7 + $0x98] sm:$0xff]
    %v270 = vld [vmem:[#allocation7 + $0xa0] sm:$0xff]
    %v271 = vld [vmem:[#allocation7 + $0xa8] sm:$0xff]
    %v272 = vld [vmem:[#allocation7 + $0xb0] sm:$0xff]
    %v273 = vld [vmem:[#allocation7 + $0xb8] sm:$0xff]
    %v274 = vld [vmem:[#allocation7 + $0xc0] sm:$0xff]
    %v275 = vld [vmem:[#allocation7 + $0xc8] sm:$0xff]
    %v276 = vld [vmem:[#allocation7 + $0xd0] sm:$0xff]
    %v277 = vld [vmem:[#allocation7 + $0xd8] sm:$0xff]
    %v278 = vld [vmem:[#allocation7 + $0xe0] sm:$0xff]
    %v279 = vld [vmem:[#allocation7 + $0xe8] sm:$0xff]
    %v280 = vld [vmem:[#allocation7 + $0xf0] sm:$0xff]
    %v281 = vld [vmem:[#allocation7 + $0xf8] sm:$0xff]
    %v282 = vld [vmem:[%s4] sm:$0x1]
    %v284 = vlaneseq
    %v285 = vshrl.u32 %v284, 7
    %v286 = vsub.s32 0, %v285
    %v287 = vrot.slane %v282, %v286
    %289 = vmatprep.subr.mxu0 0.0
    %290 = vmatpush1.msra.mxu0 %v250
    %291 = vmatprep.subr.mxu0 0.0
    %292 = vmatpush1.msra.mxu0 %v251
    %293 = vmatprep.subr.mxu0 0.0
    %294 = vmatpush1.msra.mxu0 %v252
    %295 = vmatprep.subr.mxu0 0.0
    %296 = vmatpush1.msra.mxu0 %v253
    %297 = vmatprep.subr.mxu0 0.0
    %298 = vmatpush1.msra.mxu0 %v254
    %299 = vmatprep.subr.mxu0 0.0
    %300 = vmatpush1.msra.mxu0 %v255
    %301 = vmatprep.subr.mxu0 0.0
    %302 = vmatpush1.msra.mxu0 %v256
    %303 = vmatprep.subr.mxu0 0.0
    %304 = vmatpush1.msra.mxu0 %v257
    %305 = vmatprep.subr.mxu0 0.0
    %306 = vmatpush1.msra.mxu0 %v258
    %307 = vmatprep.subr.mxu0 0.0
    %308 = vmatpush1.msra.mxu0 %v259
    %309 = vmatprep.subr.mxu0 0.0
    %310 = vmatpush1.msra.mxu0 %v260
    %311 = vmatprep.subr.mxu0 0.0
    %312 = vmatpush1.msra.mxu0 %v261
    %313 = vmatprep.subr.mxu0 0.0
    %314 = vmatpush1.msra.mxu0 %v262
    %315 = vmatprep.subr.mxu0 0.0
    %316 = vmatpush1.msra.mxu0 %v263
    %317 = vmatprep.subr.mxu0 0.0
    %318 = vmatpush1.msra.mxu0 %v264
    %319 = vmatprep.subr.mxu0 0.0
    %320 = vmatpush1.msra.mxu0 %v265
    %321 = vmatprep.subr.mxu0 0.0
    %322 = vmatpush1.msra.mxu0 %v266
    %323 = vmatprep.subr.mxu0 0.0
    %324 = vmatpush1.msra.mxu0 %v267
    %325 = vmatprep.subr.mxu0 0.0
    %326 = vmatpush1.msra.mxu0 %v268
    %327 = vmatprep.subr.mxu0 0.0
    %328 = vmatpush1.msra.mxu0 %v269
    %329 = vmatprep.subr.mxu0 0.0
    %330 = vmatpush1.msra.mxu0 %v270
    %331 = vmatprep.subr.mxu0 0.0
    %332 = vmatpush1.msra.mxu0 %v271
    %333 = vmatprep.subr.mxu0 0.0
    %334 = vmatpush1.msra.mxu0 %v272
    %335 = vmatprep.subr.mxu0 0.0
    %336 = vmatpush1.msra.mxu0 %v273
    %337 = vmatprep.subr.mxu0 0.0
    %338 = vmatpush1.msra.mxu0 %v274
    %339 = vmatprep.subr.mxu0 0.0
    %340 = vmatpush1.msra.mxu0 %v275
    %341 = vmatprep.subr.mxu0 0.0
    %342 = vmatpush1.msra.mxu0 %v276
    %343 = vmatprep.subr.mxu0 0.0
    %344 = vmatpush1.msra.mxu0 %v277
    %345 = vmatprep.subr.mxu0 0.0
    %346 = vmatpush1.msra.mxu0 %v278
    %347 = vmatprep.subr.mxu0 0.0
    %348 = vmatpush1.msra.mxu0 %v279
    %349 = vmatprep.subr.mxu0 0.0
    %350 = vmatpush1.msra.mxu0 %v280
    %351 = vmatprep.subr.mxu0 0.0
    %352 = vmatpush1.msra.mxu0 %v281
    %353 = vmatprep.mubr.f32.mxu0 %v249
    %354 = vmatmul.mubr.f32.gmra.mrb[0].mxu0 %v248
    %v355 = vpop.f32.mrb[0].mxu0
    %v356 = vadd.f32 %v287, %v355
    %v357 = vpop.f32.mrb[0].mxu0
    %358 = vdwg.mxu0
    %v359 = vmax.f32 %v356, 0.0
    %v360 = vld [vmem:[#allocation8] sm:$0xff]
    %v361 = vld [vmem:[#allocation8 + $0x8] sm:$0xff]
    %v362 = vld [vmem:[#allocation8 + $0x10] sm:$0xff]
    %v363 = vld [vmem:[#allocation8 + $0x18] sm:$0xff]
    %v364 = vld [vmem:[#allocation8 + $0x20] sm:$0xff]
    %v365 = vld [vmem:[#allocation8 + $0x28] sm:$0xff]
    %v366 = vld [vmem:[#allocation8 + $0x30] sm:$0xff]
    %v367 = vld [vmem:[#allocation8 + $0x38] sm:$0xff]
    %v368 = vld [vmem:[#allocation8 + $0x40] sm:$0xff]
    %v369 = vld [vmem:[#allocation8 + $0x48] sm:$0xff]
    %v370 = vld [vmem:[#allocation8 + $0x50] sm:$0xff]
    %v371 = vld [vmem:[#allocation8 + $0x58] sm:$0xff]
    %v372 = vld [vmem:[#allocation8 + $0x60] sm:$0xff]
    %v373 = vld [vmem:[#allocation8 + $0x68] sm:$0xff]
    %v374 = vld [vmem:[#allocation8 + $0x70] sm:$0xff]
    %v375 = vld [vmem:[#allocation8 + $0x78] sm:$0xff]
    %v376 = vld [vmem:[#allocation8 + $0x80] sm:$0xff]
    %v377 = vld [vmem:[#allocation8 + $0x88] sm:$0xff]
    %v378 = vld [vmem:[#allocation8 + $0x90] sm:$0xff]
    %v379 = vld [vmem:[#allocation8 + $0x98] sm:$0xff]
    %v380 = vld [vmem:[#allocation8 + $0xa0] sm:$0xff]
    %v381 = vld [vmem:[#allocation8 + $0xa8] sm:$0xff]
    %v382 = vld [vmem:[#allocation8 + $0xb0] sm:$0xff]
    %v383 = vld [vmem:[#allocation8 + $0xb8] sm:$0xff]
    %v384 = vld [vmem:[#allocation8 + $0xc0] sm:$0xff]
    %v385 = vld [vmem:[#allocation8 + $0xc8] sm:$0xff]
    %v386 = vld [vmem:[#allocation8 + $0xd0] sm:$0xff]
    %v387 = vld [vmem:[#allocation8 + $0xd8] sm:$0xff]
    %v388 = vld [vmem:[#allocation8 + $0xe0] sm:$0xff]
    %v389 = vld [vmem:[#allocation8 + $0xe8] sm:$0xff]
    %v390 = vld [vmem:[#allocation8 + $0xf0] sm:$0xff]
    %v391 = vld [vmem:[#allocation8 + $0xf8] sm:$0xff]
    %v392 = vld [vmem:[%s6] sm:$0x3]
    %v394 = vlaneseq
    %v395 = vshrl.u32 %v394, 7
    %v396 = vsub.s32 0, %v395
    %v397 = vrot.slane %v392, %v396
    %v398 = vlaneseq
    %v399 = vshrl.u32 %v398, 7
    %v400 = vsub.s32 1, %v399
    %v401 = vrot.slane %v392, %v400
    %404 = vmatprep.subr.mxu0 %v361
    %405 = vmatpush1.msra.mxu0 %v360
    %406 = vmatprep.subr.mxu0 %v363
    %407 = vmatpush1.msra.mxu0 %v362
    %408 = vmatprep.subr.mxu0 %v365
    %409 = vmatpush1.msra.mxu0 %v364
    %410 = vmatprep.subr.mxu0 %v367
    %411 = vmatpush1.msra.mxu0 %v366
    %412 = vmatprep.subr.mxu0 %v369
    %413 = vmatpush1.msra.mxu0 %v368
    %414 = vmatprep.subr.mxu0 %v371
    %415 = vmatpush1.msra.mxu0 %v370
    %416 = vmatprep.subr.mxu0 %v373
    %417 = vmatpush1.msra.mxu0 %v372
    %418 = vmatprep.subr.mxu0 %v375
    %419 = vmatpush1.msra.mxu0 %v374
    %420 = vmatprep.subr.mxu0 %v377
    %421 = vmatpush1.msra.mxu0 %v376
    %422 = vmatprep.subr.mxu0 %v379
    %423 = vmatpush1.msra.mxu0 %v378
    %424 = vmatprep.subr.mxu0 %v381
    %425 = vmatpush1.msra.mxu0 %v380
    %426 = vmatprep.subr.mxu0 %v383
    %427 = vmatpush1.msra.mxu0 %v382
    %428 = vmatprep.subr.mxu0 %v385
    %429 = vmatpush1.msra.mxu0 %v384
    %430 = vmatprep.subr.mxu0 %v387
    %431 = vmatpush1.msra.mxu0 %v386
    %432 = vmatprep.subr.mxu0 %v389
    %433 = vmatpush1.msra.mxu0 %v388
    %434 = vmatprep.subr.mxu0 %v391
    %435 = vmatpush1.msra.mxu0 %v390
    %436 = vmatprep.subr.mxu0 0.0
    %437 = vmatpush1.msra.mxu0 0.0
    %438 = vmatprep.subr.mxu0 0.0
    %439 = vmatpush1.msra.mxu0 0.0
    %440 = vmatprep.subr.mxu0 0.0
    %441 = vmatpush1.msra.mxu0 0.0
    %442 = vmatprep.subr.mxu0 0.0
    %443 = vmatpush1.msra.mxu0 0.0
    %444 = vmatprep.subr.mxu0 0.0
    %445 = vmatpush1.msra.mxu0 0.0
    %446 = vmatprep.subr.mxu0 0.0
    %447 = vmatpush1.msra.mxu0 0.0
    %448 = vmatprep.subr.mxu0 0.0
    %449 = vmatpush1.msra.mxu0 0.0
    %450 = vmatprep.subr.mxu0 0.0
    %451 = vmatpush1.msra.mxu0 0.0
    %452 = vmatprep.subr.mxu0 0.0
    %453 = vmatpush1.msra.mxu0 0.0
    %454 = vmatprep.subr.mxu0 0.0
    %455 = vmatpush1.msra.mxu0 0.0
    %456 = vmatprep.subr.mxu0 0.0
    %457 = vmatpush1.msra.mxu0 0.0
    %458 = vmatprep.subr.mxu0 0.0
    %459 = vmatpush1.msra.mxu0 0.0
    %460 = vmatprep.subr.mxu0 0.0
    %461 = vmatpush1.msra.mxu0 0.0
    %462 = vmatprep.subr.mxu0 0.0
    %463 = vmatpush1.msra.mxu0 0.0
    %464 = vmatprep.subr.mxu0 0.0
    %465 = vmatpush1.msra.mxu0 0.0
    %466 = vmatprep.subr.mxu0 0.0
    %467 = vmatpush1.msra.mxu0 0.0
    %468 = vmatprep.mubr.f32.mxu0 0.0
    %469 = vmatmul.mubr.f32.gmra.mrb[0].mxu0 %v359
    %v470 = vpop.f32.mrb[0].mxu0
    %v471 = vadd.f32 %v397, %v470
    %v472 = vpop.f32.mrb[0].mxu0
    %v473 = vadd.f32 %v401, %v472
    %474 = vdwg.mxu0
    %v475 = vmax.f32 %v471, 0.0
    %v476 = vmax.f32 %v473, 0.0
    %v477 = vld [vmem:[#allocation10] sm:$0xff]
    %v478 = vld [vmem:[#allocation10 + $0x8] sm:$0xff]
    %v479 = vld [vmem:[#allocation10 + $0x10] sm:$0xff]
    %v480 = vld [vmem:[#allocation10 + $0x18] sm:$0xff]
    %v481 = vld [vmem:[#allocation10 + $0x20] sm:$0xff]
    %v482 = vld [vmem:[#allocation10 + $0x28] sm:$0xff]
    %v483 = vld [vmem:[#allocation10 + $0x30] sm:$0xff]
    %v484 = vld [vmem:[#allocation10 + $0x38] sm:$0xff]
    %v485 = vld [vmem:[#allocation10 + $0x40] sm:$0xff]
    %v486 = vld [vmem:[#allocation10 + $0x48] sm:$0xff]
    %v487 = vld [vmem:[#allocation10 + $0x50] sm:$0xff]
    %v488 = vld [vmem:[#allocation10 + $0x58] sm:$0xff]
    %v489 = vld [vmem:[#allocation10 + $0x60] sm:$0xff]
    %v490 = vld [vmem:[#allocation10 + $0x68] sm:$0xff]
    %v491 = vld [vmem:[#allocation10 + $0x70] sm:$0xff]
    %v492 = vld [vmem:[#allocation10 + $0x78] sm:$0xff]
    %v493 = vld [vmem:[#allocation10 + $0x80] sm:$0xff]
    %v494 = vld [vmem:[#allocation10 + $0x88] sm:$0xff]
    %v495 = vld [vmem:[#allocation10 + $0x90] sm:$0xff]
    %v496 = vld [vmem:[#allocation10 + $0x98] sm:$0xff]
    %v497 = vld [vmem:[#allocation10 + $0xa0] sm:$0xff]
    %v498 = vld [vmem:[#allocation10 + $0xa8] sm:$0xff]
    %v499 = vld [vmem:[#allocation10 + $0xb0] sm:$0xff]
    %v500 = vld [vmem:[#allocation10 + $0xb8] sm:$0xff]
    %v501 = vld [vmem:[#allocation10 + $0xc0] sm:$0xff]
    %v502 = vld [vmem:[#allocation10 + $0xc8] sm:$0xff]
    %v503 = vld [vmem:[#allocation10 + $0xd0] sm:$0xff]
    %v504 = vld [vmem:[#allocation10 + $0xd8] sm:$0xff]
    %v505 = vld [vmem:[#allocation10 + $0xe0] sm:$0xff]
    %v506 = vld [vmem:[#allocation10 + $0xe8] sm:$0xff]
    %v507 = vld [vmem:[#allocation10 + $0xf0] sm:$0xff]
    %v508 = vld [vmem:[#allocation10 + $0xf8] sm:$0xff]
    %v509 = vld [vmem:[#allocation10 + $0x100] sm:$0xff]
    %v510 = vld [vmem:[#allocation10 + $0x108] sm:$0xff]
    %v511 = vld [vmem:[#allocation10 + $0x110] sm:$0xff]
    %v512 = vld [vmem:[#allocation10 + $0x118] sm:$0xff]
    %v513 = vld [vmem:[#allocation10 + $0x120] sm:$0xff]
    %v514 = vld [vmem:[#allocation10 + $0x128] sm:$0xff]
    %v515 = vld [vmem:[#allocation10 + $0x130] sm:$0xff]
    %v516 = vld [vmem:[#allocation10 + $0x138] sm:$0xff]
    %v517 = vld [vmem:[#allocation10 + $0x140] sm:$0xff]
    %v518 = vld [vmem:[#allocation10 + $0x148] sm:$0xff]
    %v519 = vld [vmem:[#allocation10 + $0x150] sm:$0xff]
    %v520 = vld [vmem:[#allocation10 + $0x158] sm:$0xff]
    %v521 = vld [vmem:[#allocation10 + $0x160] sm:$0xff]
    %v522 = vld [vmem:[#allocation10 + $0x168] sm:$0xff]
    %v523 = vld [vmem:[#allocation10 + $0x170] sm:$0xff]
    %v524 = vld [vmem:[#allocation10 + $0x178] sm:$0xff]
    %v525 = vld [vmem:[#allocation10 + $0x180] sm:$0xff]
    %v526 = vld [vmem:[#allocation10 + $0x188] sm:$0xff]
    %v527 = vld [vmem:[#allocation10 + $0x190] sm:$0xff]
    %v528 = vld [vmem:[#allocation10 + $0x198] sm:$0xff]
    %v529 = vld [vmem:[#allocation10 + $0x1a0] sm:$0xff]
    %v530 = vld [vmem:[#allocation10 + $0x1a8] sm:$0xff]
    %v531 = vld [vmem:[#allocation10 + $0x1b0] sm:$0xff]
    %v532 = vld [vmem:[#allocation10 + $0x1b8] sm:$0xff]
    %v533 = vld [vmem:[#allocation10 + $0x1c0] sm:$0xff]
    %v534 = vld [vmem:[#allocation10 + $0x1c8] sm:$0xff]
    %v535 = vld [vmem:[#allocation10 + $0x1d0] sm:$0xff]
    %v536 = vld [vmem:[#allocation10 + $0x1d8] sm:$0xff]
    %v537 = vld [vmem:[#allocation10 + $0x1e0] sm:$0xff]
    %v538 = vld [vmem:[#allocation10 + $0x1e8] sm:$0xff]
    %v539 = vld [vmem:[#allocation10 + $0x1f0] sm:$0xff]
    %v540 = vld [vmem:[#allocation10 + $0x1f8] sm:$0xff]
    %v541 = vld [vmem:[%s8] sm:$0x3]
    %v543 = vlaneseq
    %v544 = vshrl.u32 %v543, 7
    %v545 = vsub.s32 0, %v544
    %v546 = vrot.slane %v541, %v545
    %v547 = vlaneseq
    %v548 = vshrl.u32 %v547, 7
    %v549 = vsub.s32 1, %v548
    %v550 = vrot.slane %v541, %v549
    %553 = vmatprep.subr.mxu0 %v478
    %554 = vmatpush1.msra.mxu0 %v477
    %555 = vmatprep.subr.mxu0 %v480
    %556 = vmatpush1.msra.mxu0 %v479
    %557 = vmatprep.subr.mxu0 %v482
    %558 = vmatpush1.msra.mxu0 %v481
    %559 = vmatprep.subr.mxu0 %v484
    %560 = vmatpush1.msra.mxu0 %v483
    %561 = vmatprep.subr.mxu0 %v486
    %562 = vmatpush1.msra.mxu0 %v485
    %563 = vmatprep.subr.mxu0 %v488
    %564 = vmatpush1.msra.mxu0 %v487
    %565 = vmatprep.subr.mxu0 %v490
    %566 = vmatpush1.msra.mxu0 %v489
    %567 = vmatprep.subr.mxu0 %v492
    %568 = vmatpush1.msra.mxu0 %v491
    %569 = vmatprep.subr.mxu0 %v494
    %570 = vmatpush1.msra.mxu0 %v493
    %571 = vmatprep.subr.mxu0 %v496
    %572 = vmatpush1.msra.mxu0 %v495
    %573 = vmatprep.subr.mxu0 %v498
    %574 = vmatpush1.msra.mxu0 %v497
    %575 = vmatprep.subr.mxu0 %v500
    %576 = vmatpush1.msra.mxu0 %v499
    %577 = vmatprep.subr.mxu0 %v502
    %578 = vmatpush1.msra.mxu0 %v501
    %579 = vmatprep.subr.mxu0 %v504
    %580 = vmatpush1.msra.mxu0 %v503
    %581 = vmatprep.subr.mxu0 %v506
    %582 = vmatpush1.msra.mxu0 %v505
    %583 = vmatprep.subr.mxu0 %v508
    %584 = vmatpush1.msra.mxu0 %v507
    %585 = vmatprep.subr.mxu0 %v510
    %586 = vmatpush1.msra.mxu0 %v509
    %587 = vmatprep.subr.mxu0 %v512
    %588 = vmatpush1.msra.mxu0 %v511
    %589 = vmatprep.subr.mxu0 %v514
    %590 = vmatpush1.msra.mxu0 %v513
    %591 = vmatprep.subr.mxu0 %v516
    %592 = vmatpush1.msra.mxu0 %v515
    %593 = vmatprep.subr.mxu0 %v518
    %594 = vmatpush1.msra.mxu0 %v517
    %595 = vmatprep.subr.mxu0 %v520
    %596 = vmatpush1.msra.mxu0 %v519
    %597 = vmatprep.subr.mxu0 %v522
    %598 = vmatpush1.msra.mxu0 %v521
    %599 = vmatprep.subr.mxu0 %v524
    %600 = vmatpush1.msra.mxu0 %v523
    %601 = vmatprep.subr.mxu0 %v526
    %602 = vmatpush1.msra.mxu0 %v525
    %603 = vmatprep.subr.mxu0 %v528
    %604 = vmatpush1.msra.mxu0 %v527
    %605 = vmatprep.subr.mxu0 %v530
    %606 = vmatpush1.msra.mxu0 %v529
    %607 = vmatprep.subr.mxu0 %v532
    %608 = vmatpush1.msra.mxu0 %v531
    %609 = vmatprep.subr.mxu0 %v534
    %610 = vmatpush1.msra.mxu0 %v533
    %611 = vmatprep.subr.mxu0 %v536
    %612 = vmatpush1.msra.mxu0 %v535
    %613 = vmatprep.subr.mxu0 %v538
    %614 = vmatpush1.msra.mxu0 %v537
    %615 = vmatprep.subr.mxu0 %v540
    %616 = vmatpush1.msra.mxu0 %v539
    %617 = vmatprep.mubr.f32.mxu0 %v476
    %618 = vmatmul.mubr.f32.gmra.mrb[0].mxu0 %v475
    %v619 = vpop.f32.mrb[0].mxu0
    %v620 = vadd.f32 %v546, %v619
    %v621 = vpop.f32.mrb[0].mxu0
    %v622 = vadd.f32 %v550, %v621
    %623 = vdwg.mxu0
    %624 = vst [vmem:[#allocation11] sm:$0xff] %v620
    %625 = vst [vmem:[#allocation11 + $0x8] sm:$0xff] %v622
    // Predicated region
    $region58: #{tpu_custom_call.1} parent=1 // pred_check
      _
    $region59: #{tpu_custom_call.1} parent=1 // pred_check_branch
      %627 = sbr.rel (0) target = $region61
    $region60: #{tpu_custom_call.1} parent=1 // pred_region
      %s629 = ssub.s32 256, 256
      %630 = vsyncadd [#allocation4], %s629
      %s632 = sshll.u32 [#allocation11], 4
      %s633 = int_to_ptr.vmem [resolvable:$true] %s632
      %635 = dma.vmem_to_hbm [thread:$0]  %s633, 256, %s9, [#allocation4]
    $region61: #{tpu_custom_call.1} parent=1 // pred_fallthru
      _
    // Predicated region
    $region62: #{tpu_custom_call.1} parent=1 // pred_check
      _
    $region63: #{tpu_custom_call.1} parent=1 // pred_check_branch
      %637 = sbr.rel (0) target = $region65
    $region64: #{tpu_custom_call.1} parent=1 // pred_region
      %638 = dma.done [#allocation4], 256
    $region65: #{tpu_custom_call.1} parent=1 // pred_fallthru
      _
    %639 = vsyncpa [#allocation3], 1
    %640 = vsyncpa [#allocation6], 1
    %641 = vsyncpa [#allocation9], 1
    %642 = vsyncpa [#allocation4], 1

</llo_original>
